<compile_context>
chip_gen: v7x
topology: tpu7x:2x2x1
jax: 0.10.0
libtpu: 0.0.40
codegen_flags: <defaults>
</compile_context>

<pallas_src>
import jax
import jax.numpy as jnp
from jax.experimental import pallas as pl
from jax.experimental.pallas import tpu as pltpu

N_IN = 6    # linear1 in_features
N_HID = 4   # linear1 out_features / linear2 in_features
N_OUT = 1   # linear2 out_features


def _sigmoid(z):
    # exp + approx reciprocal -> EUP slot, keeps VALU slots free.
    return pl.reciprocal(1.0 + jnp.exp(-z), approx=True)


def mlp_kernel(w1_ref, b1_ref, w2_ref, b2_ref, x_ref, o_ref):
    """x_ref: (6, block_b) VMEM (batch in lanes).  o_ref: (1, block_b).

    w1_ref (6,4), b1_ref (4,), w2_ref (4,1), b2_ref (1,) are SMEM scalars.
    """
    x = x_ref[...]                                   # (6, blk) f32
    blk = x.shape[1]

    # Second-layer accumulator, initialized with its bias.
    y = jnp.zeros((1, blk), jnp.float32) + b2_ref[0]

    # Fully unrolled: 4 hidden units x 6 scalar*vector FMAs each, then one
    # scalar*vector FMA per hidden unit into the output accumulator.
    for j in range(N_HID):
        h = jnp.zeros((1, blk), jnp.float32) + b1_ref[j]
        for i in range(N_IN):
            h = h + w1_ref[i, j] * x[i:i + 1, :]
        y = y + w2_ref[j, 0] * _sigmoid(h)

    o_ref[...] = _sigmoid(y).astype(o_ref.dtype)


def mlp_forward(x, w1, b1, w2, b2, *, block_b=1024):
    """x: (B, 6) f32 -> (B, 1) f32.

    Weights stored transposed vs torch: w1 (6,4), b1 (4,), w2 (4,1), b2 (1,).
    """
    assert block_b % 128 == 0, "batch block must be a multiple of 128 lanes"
    B = x.shape[0]

    # Batch-in-lanes layout; pad batch up to a multiple of the block size.
    xt = jnp.asarray(x, jnp.float32).T               # (6, B)
    Bp = ((B + block_b - 1) // block_b) * block_b
    if Bp != B:
        xt = jnp.pad(xt, ((0, 0), (0, Bp - B)))

    smem = pl.BlockSpec(memory_space=pltpu.MemorySpace.SMEM)

    out = pl.pallas_call(
        mlp_kernel,
        out_shape=jax.ShapeDtypeStruct((1, Bp), jnp.float32),
        grid_spec=pltpu.PrefetchScalarGridSpec(
            num_scalar_prefetch=0,
            grid=(Bp // block_b,),
            in_specs=[
                smem,                                             # w1 (6,4)
                smem,                                             # b1 (4,)
                smem,                                             # w2 (4,1)
                smem,                                             # b2 (1,)
                pl.BlockSpec((N_IN, block_b), lambda i: (0, i)),  # x  (6, blk)
            ],
            out_specs=pl.BlockSpec((N_OUT, block_b), lambda i: (0, i)),
        ),
        compiler_params=pltpu.CompilerParams(
            dimension_semantics=("parallel",),   # shard batch across TCs (v7x)
        ),
    )(w1, b1, w2, b2, xt)

    return out[:, :B].T                              # (B, 1)


def init_params():
    """Deterministic params mimicking torch.nn.Linear default init.

    linear1: weight (4, 6), bias (4)   -> stored as w1 (6, 4), b1 (4,)
    linear2: weight (1, 4), bias (1)   -> stored as w2 (4, 1), b2 (1,)
    """
    k = jax.random.PRNGKey(42)
    k1, k2, k3, k4 = jax.random.split(k, 4)
    bound1 = 1.0 / jnp.sqrt(6.0)
    bound2 = 1.0 / jnp.sqrt(4.0)
    w1 = jax.random.uniform(k1, (N_IN, N_HID), jnp.float32, -bound1, bound1)
    b1 = jax.random.uniform(k2, (N_HID,), jnp.float32, -bound1, bound1)
    w2 = jax.random.uniform(k3, (N_HID, N_OUT), jnp.float32, -bound2, bound2)
    b2 = jax.random.uniform(k4, (N_OUT,), jnp.float32, -bound2, bound2)
    return w1, b1, w2, b2


if __name__ == "__main__":
    key = jax.random.PRNGKey(0)
    B = 1000                       # deliberately not a multiple of the block
    x = jax.random.normal(key, (B, N_IN), dtype=jnp.float32)

    w1, b1, w2, b2 = init_params()

    out = mlp_forward(x, w1, b1, w2, b2, block_b=512)
    out = jax.block_until_ready(out)

    # Pure-JAX reference (same math, no Pallas).
    ref = jax.nn.sigmoid(jax.nn.sigmoid(x @ w1 + b1) @ w2 + b2)
    assert out.shape == (B, 1)
    # Tolerance loosened slightly for the approx-reciprocal EUP sigmoid.
    assert jnp.allclose(out, ref, atol=2e-3, rtol=2e-3), float(
        jnp.max(jnp.abs(out - ref)))

    print("KERNEL_OK")
</pallas_src>

<mosaic_0001>
module attributes {stable_mosaic.version = 11 : i64} {
  func.func @mlp_kernel(%arg0: i32, %arg1: memref<6x4xf32, #tpu.memory_space<smem>>, %arg2: memref<4xf32, #tpu.memory_space<smem>>, %arg3: memref<4x1xf32, #tpu.memory_space<smem>>, %arg4: memref<1xf32, #tpu.memory_space<smem>>, %arg5: memref<6x512xf32, #tpu.memory_space<vmem>>, %arg6: memref<1x512xf32, #tpu.memory_space<vmem>>) attributes {dimension_semantics = [#tpu.dimension_semantics<parallel>], iteration_bounds = array<i64: 2>, scalar_prefetch = 0 : i64, scratch_operands = 0 : i64, tpu.core_type = #tpu.core_type<tc>, window_params = [{transform_indices = @transform_0, window_bounds = array<i64: 6, 4>}, {transform_indices = @transform_1, window_bounds = array<i64: 4>}, {transform_indices = @transform_2, window_bounds = array<i64: 4, 1>}, {transform_indices = @transform_3, window_bounds = array<i64: 1>}, {transform_indices = @transform_4, window_bounds = array<i64: 6, 512>}, {transform_indices = @transform_5, window_bounds = array<i64: 1, 512>}]} {
    %c0 = arith.constant 0 : index
    %c0_0 = arith.constant 0 : index
    %0 = vector.load %arg5[%c0, %c0_0] : memref<6x512xf32, #tpu.memory_space<vmem>>, vector<6x512xf32>
    %cst = arith.constant 0.000000e+00 : f32
    %1 = vector.broadcast %cst : f32 to vector<1x512xf32>
    %c0_1 = arith.constant 0 : index
    %2 = memref.load %arg4[%c0_1] : memref<1xf32, #tpu.memory_space<smem>>
    %3 = vector.broadcast %2 : f32 to vector<1x512xf32>
    %4 = arith.addf %1, %3 : vector<1x512xf32>
    %cst_2 = arith.constant 0.000000e+00 : f32
    %5 = vector.broadcast %cst_2 : f32 to vector<1x512xf32>
    %c0_3 = arith.constant 0 : index
    %6 = memref.load %arg2[%c0_3] : memref<4xf32, #tpu.memory_space<smem>>
    %7 = vector.broadcast %6 : f32 to vector<1x512xf32>
    %8 = arith.addf %5, %7 : vector<1x512xf32>
    %c0_4 = arith.constant 0 : index
    %c0_5 = arith.constant 0 : index
    %9 = memref.load %arg1[%c0_4, %c0_5] : memref<6x4xf32, #tpu.memory_space<smem>>
    %10 = vector.extract_strided_slice %0 {offsets = [0, 0], sizes = [1, 512], strides = [1, 1]} : vector<6x512xf32> to vector<1x512xf32>
    %11 = vector.broadcast %9 : f32 to vector<1x512xf32>
    %12 = arith.mulf %11, %10 : vector<1x512xf32>
    %13 = arith.addf %8, %12 : vector<1x512xf32>
    %c1 = arith.constant 1 : index
    %c0_6 = arith.constant 0 : index
    %14 = memref.load %arg1[%c1, %c0_6] : memref<6x4xf32, #tpu.memory_space<smem>>
    %15 = vector.extract_strided_slice %0 {offsets = [1, 0], sizes = [1, 512], strides = [1, 1]} : vector<6x512xf32> to vector<1x512xf32>
    %16 = vector.broadcast %14 : f32 to vector<1x512xf32>
    %17 = arith.mulf %16, %15 : vector<1x512xf32>
    %18 = arith.addf %13, %17 : vector<1x512xf32>
    %c2 = arith.constant 2 : index
    %c0_7 = arith.constant 0 : index
    %19 = memref.load %arg1[%c2, %c0_7] : memref<6x4xf32, #tpu.memory_space<smem>>
    %20 = vector.extract_strided_slice %0 {offsets = [2, 0], sizes = [1, 512], strides = [1, 1]} : vector<6x512xf32> to vector<1x512xf32>
    %21 = vector.broadcast %19 : f32 to vector<1x512xf32>
    %22 = arith.mulf %21, %20 : vector<1x512xf32>
    %23 = arith.addf %18, %22 : vector<1x512xf32>
    %c3 = arith.constant 3 : index
    %c0_8 = arith.constant 0 : index
    %24 = memref.load %arg1[%c3, %c0_8] : memref<6x4xf32, #tpu.memory_space<smem>>
    %25 = vector.extract_strided_slice %0 {offsets = [3, 0], sizes = [1, 512], strides = [1, 1]} : vector<6x512xf32> to vector<1x512xf32>
    %26 = vector.broadcast %24 : f32 to vector<1x512xf32>
    %27 = arith.mulf %26, %25 : vector<1x512xf32>
    %28 = arith.addf %23, %27 : vector<1x512xf32>
    %c4 = arith.constant 4 : index
    %c0_9 = arith.constant 0 : index
    %29 = memref.load %arg1[%c4, %c0_9] : memref<6x4xf32, #tpu.memory_space<smem>>
    %30 = vector.extract_strided_slice %0 {offsets = [4, 0], sizes = [1, 512], strides = [1, 1]} : vector<6x512xf32> to vector<1x512xf32>
    %31 = vector.broadcast %29 : f32 to vector<1x512xf32>
    %32 = arith.mulf %31, %30 : vector<1x512xf32>
    %33 = arith.addf %28, %32 : vector<1x512xf32>
    %c5 = arith.constant 5 : index
    %c0_10 = arith.constant 0 : index
    %34 = memref.load %arg1[%c5, %c0_10] : memref<6x4xf32, #tpu.memory_space<smem>>
    %35 = vector.extract_strided_slice %0 {offsets = [5, 0], sizes = [1, 512], strides = [1, 1]} : vector<6x512xf32> to vector<1x512xf32>
    %36 = vector.broadcast %34 : f32 to vector<1x512xf32>
    %37 = arith.mulf %36, %35 : vector<1x512xf32>
    %38 = arith.addf %33, %37 : vector<1x512xf32>
    %c0_11 = arith.constant 0 : index
    %c0_12 = arith.constant 0 : index
    %39 = memref.load %arg3[%c0_11, %c0_12] : memref<4x1xf32, #tpu.memory_space<smem>>
    %cst_13 = arith.constant 0.000000e+00 : f32
    %40 = vector.broadcast %cst_13 : f32 to vector<1x512xf32>
    %41 = arith.subf %40, %38 : vector<1x512xf32>
    %42 = math.exp %41 : vector<1x512xf32>
    %cst_14 = arith.constant 1.000000e+00 : f32
    %43 = vector.broadcast %cst_14 : f32 to vector<1x512xf32>
    %44 = arith.addf %43, %42 : vector<1x512xf32>
    %45 = tpu.reciprocal %44 {approx = true} : vector<1x512xf32> -> vector<1x512xf32>
    %46 = vector.broadcast %39 : f32 to vector<1x512xf32>
    %47 = arith.mulf %46, %45 : vector<1x512xf32>
    %48 = arith.addf %4, %47 : vector<1x512xf32>
    %cst_15 = arith.constant 0.000000e+00 : f32
    %49 = vector.broadcast %cst_15 : f32 to vector<1x512xf32>
    %c1_16 = arith.constant 1 : index
    %50 = memref.load %arg2[%c1_16] : memref<4xf32, #tpu.memory_space<smem>>
    %51 = vector.broadcast %50 : f32 to vector<1x512xf32>
    %52 = arith.addf %49, %51 : vector<1x512xf32>
    %c0_17 = arith.constant 0 : index
    %c1_18 = arith.constant 1 : index
    %53 = memref.load %arg1[%c0_17, %c1_18] : memref<6x4xf32, #tpu.memory_space<smem>>
    %54 = vector.extract_strided_slice %0 {offsets = [0, 0], sizes = [1, 512], strides = [1, 1]} : vector<6x512xf32> to vector<1x512xf32>
    %55 = vector.broadcast %53 : f32 to vector<1x512xf32>
    %56 = arith.mulf %55, %54 : vector<1x512xf32>
    %57 = arith.addf %52, %56 : vector<1x512xf32>
    %c1_19 = arith.constant 1 : index
    %c1_20 = arith.constant 1 : index
    %58 = memref.load %arg1[%c1_19, %c1_20] : memref<6x4xf32, #tpu.memory_space<smem>>
    %59 = vector.extract_strided_slice %0 {offsets = [1, 0], sizes = [1, 512], strides = [1, 1]} : vector<6x512xf32> to vector<1x512xf32>
    %60 = vector.broadcast %58 : f32 to vector<1x512xf32>
    %61 = arith.mulf %60, %59 : vector<1x512xf32>
    %62 = arith.addf %57, %61 : vector<1x512xf32>
    %c2_21 = arith.constant 2 : index
    %c1_22 = arith.constant 1 : index
    %63 = memref.load %arg1[%c2_21, %c1_22] : memref<6x4xf32, #tpu.memory_space<smem>>
    %64 = vector.extract_strided_slice %0 {offsets = [2, 0], sizes = [1, 512], strides = [1, 1]} : vector<6x512xf32> to vector<1x512xf32>
    %65 = vector.broadcast %63 : f32 to vector<1x512xf32>
    %66 = arith.mulf %65, %64 : vector<1x512xf32>
    %67 = arith.addf %62, %66 : vector<1x512xf32>
    %c3_23 = arith.constant 3 : index
    %c1_24 = arith.constant 1 : index
    %68 = memref.load %arg1[%c3_23, %c1_24] : memref<6x4xf32, #tpu.memory_space<smem>>
    %69 = vector.extract_strided_slice %0 {offsets = [3, 0], sizes = [1, 512], strides = [1, 1]} : vector<6x512xf32> to vector<1x512xf32>
    %70 = vector.broadcast %68 : f32 to vector<1x512xf32>
    %71 = arith.mulf %70, %69 : vector<1x512xf32>
    %72 = arith.addf %67, %71 : vector<1x512xf32>
    %c4_25 = arith.constant 4 : index
    %c1_26 = arith.constant 1 : index
    %73 = memref.load %arg1[%c4_25, %c1_26] : memref<6x4xf32, #tpu.memory_space<smem>>
    %74 = vector.extract_strided_slice %0 {offsets = [4, 0], sizes = [1, 512], strides = [1, 1]} : vector<6x512xf32> to vector<1x512xf32>
    %75 = vector.broadcast %73 : f32 to vector<1x512xf32>
    %76 = arith.mulf %75, %74 : vector<1x512xf32>
    %77 = arith.addf %72, %76 : vector<1x512xf32>
    %c5_27 = arith.constant 5 : index
    %c1_28 = arith.constant 1 : index
    %78 = memref.load %arg1[%c5_27, %c1_28] : memref<6x4xf32, #tpu.memory_space<smem>>
    %79 = vector.extract_strided_slice %0 {offsets = [5, 0], sizes = [1, 512], strides = [1, 1]} : vector<6x512xf32> to vector<1x512xf32>
    %80 = vector.broadcast %78 : f32 to vector<1x512xf32>
    %81 = arith.mulf %80, %79 : vector<1x512xf32>
    %82 = arith.addf %77, %81 : vector<1x512xf32>
    %c1_29 = arith.constant 1 : index
    %c0_30 = arith.constant 0 : index
    %83 = memref.load %arg3[%c1_29, %c0_30] : memref<4x1xf32, #tpu.memory_space<smem>>
    %cst_31 = arith.constant 0.000000e+00 : f32
    %84 = vector.broadcast %cst_31 : f32 to vector<1x512xf32>
    %85 = arith.subf %84, %82 : vector<1x512xf32>
    %86 = math.exp %85 : vector<1x512xf32>
    %cst_32 = arith.constant 1.000000e+00 : f32
    %87 = vector.broadcast %cst_32 : f32 to vector<1x512xf32>
    %88 = arith.addf %87, %86 : vector<1x512xf32>
    %89 = tpu.reciprocal %88 {approx = true} : vector<1x512xf32> -> vector<1x512xf32>
    %90 = vector.broadcast %83 : f32 to vector<1x512xf32>
    %91 = arith.mulf %90, %89 : vector<1x512xf32>
    %92 = arith.addf %48, %91 : vector<1x512xf32>
    %cst_33 = arith.constant 0.000000e+00 : f32
    %93 = vector.broadcast %cst_33 : f32 to vector<1x512xf32>
    %c2_34 = arith.constant 2 : index
    %94 = memref.load %arg2[%c2_34] : memref<4xf32, #tpu.memory_space<smem>>
    %95 = vector.broadcast %94 : f32 to vector<1x512xf32>
    %96 = arith.addf %93, %95 : vector<1x512xf32>
    %c0_35 = arith.constant 0 : index
    %c2_36 = arith.constant 2 : index
    %97 = memref.load %arg1[%c0_35, %c2_36] : memref<6x4xf32, #tpu.memory_space<smem>>
    %98 = vector.extract_strided_slice %0 {offsets = [0, 0], sizes = [1, 512], strides = [1, 1]} : vector<6x512xf32> to vector<1x512xf32>
    %99 = vector.broadcast %97 : f32 to vector<1x512xf32>
    %100 = arith.mulf %99, %98 : vector<1x512xf32>
    %101 = arith.addf %96, %100 : vector<1x512xf32>
    %c1_37 = arith.constant 1 : index
    %c2_38 = arith.constant 2 : index
    %102 = memref.load %arg1[%c1_37, %c2_38] : memref<6x4xf32, #tpu.memory_space<smem>>
    %103 = vector.extract_strided_slice %0 {offsets = [1, 0], sizes = [1, 512], strides = [1, 1]} : vector<6x512xf32> to vector<1x512xf32>
    %104 = vector.broadcast %102 : f32 to vector<1x512xf32>
    %105 = arith.mulf %104, %103 : vector<1x512xf32>
    %106 = arith.addf %101, %105 : vector<1x512xf32>
    %c2_39 = arith.constant 2 : index
    %c2_40 = arith.constant 2 : index
    %107 = memref.load %arg1[%c2_39, %c2_40] : memref<6x4xf32, #tpu.memory_space<smem>>
    %108 = vector.extract_strided_slice %0 {offsets = [2, 0], sizes = [1, 512], strides = [1, 1]} : vector<6x512xf32> to vector<1x512xf32>
    %109 = vector.broadcast %107 : f32 to vector<1x512xf32>
    %110 = arith.mulf %109, %108 : vector<1x512xf32>
    %111 = arith.addf %106, %110 : vector<1x512xf32>
    %c3_41 = arith.constant 3 : index
    %c2_42 = arith.constant 2 : index
    %112 = memref.load %arg1[%c3_41, %c2_42] : memref<6x4xf32, #tpu.memory_space<smem>>
    %113 = vector.extract_strided_slice %0 {offsets = [3, 0], sizes = [1, 512], strides = [1, 1]} : vector<6x512xf32> to vector<1x512xf32>
    %114 = vector.broadcast %112 : f32 to vector<1x512xf32>
    %115 = arith.mulf %114, %113 : vector<1x512xf32>
    %116 = arith.addf %111, %115 : vector<1x512xf32>
    %c4_43 = arith.constant 4 : index
    %c2_44 = arith.constant 2 : index
    %117 = memref.load %arg1[%c4_43, %c2_44] : memref<6x4xf32, #tpu.memory_space<smem>>
    %118 = vector.extract_strided_slice %0 {offsets = [4, 0], sizes = [1, 512], strides = [1, 1]} : vector<6x512xf32> to vector<1x512xf32>
    %119 = vector.broadcast %117 : f32 to vector<1x512xf32>
    %120 = arith.mulf %119, %118 : vector<1x512xf32>
    %121 = arith.addf %116, %120 : vector<1x512xf32>
    %c5_45 = arith.constant 5 : index
    %c2_46 = arith.constant 2 : index
    %122 = memref.load %arg1[%c5_45, %c2_46] : memref<6x4xf32, #tpu.memory_space<smem>>
    %123 = vector.extract_strided_slice %0 {offsets = [5, 0], sizes = [1, 512], strides = [1, 1]} : vector<6x512xf32> to vector<1x512xf32>
    %124 = vector.broadcast %122 : f32 to vector<1x512xf32>
    %125 = arith.mulf %124, %123 : vector<1x512xf32>
    %126 = arith.addf %121, %125 : vector<1x512xf32>
    %c2_47 = arith.constant 2 : index
    %c0_48 = arith.constant 0 : index
    %127 = memref.load %arg3[%c2_47, %c0_48] : memref<4x1xf32, #tpu.memory_space<smem>>
    %cst_49 = arith.constant 0.000000e+00 : f32
    %128 = vector.broadcast %cst_49 : f32 to vector<1x512xf32>
    %129 = arith.subf %128, %126 : vector<1x512xf32>
    %130 = math.exp %129 : vector<1x512xf32>
    %cst_50 = arith.constant 1.000000e+00 : f32
    %131 = vector.broadcast %cst_50 : f32 to vector<1x512xf32>
    %132 = arith.addf %131, %130 : vector<1x512xf32>
    %133 = tpu.reciprocal %132 {approx = true} : vector<1x512xf32> -> vector<1x512xf32>
    %134 = vector.broadcast %127 : f32 to vector<1x512xf32>
    %135 = arith.mulf %134, %133 : vector<1x512xf32>
    %136 = arith.addf %92, %135 : vector<1x512xf32>
    %cst_51 = arith.constant 0.000000e+00 : f32
    %137 = vector.broadcast %cst_51 : f32 to vector<1x512xf32>
    %c3_52 = arith.constant 3 : index
    %138 = memref.load %arg2[%c3_52] : memref<4xf32, #tpu.memory_space<smem>>
    %139 = vector.broadcast %138 : f32 to vector<1x512xf32>
    %140 = arith.addf %137, %139 : vector<1x512xf32>
    %c0_53 = arith.constant 0 : index
    %c3_54 = arith.constant 3 : index
    %141 = memref.load %arg1[%c0_53, %c3_54] : memref<6x4xf32, #tpu.memory_space<smem>>
    %142 = vector.extract_strided_slice %0 {offsets = [0, 0], sizes = [1, 512], strides = [1, 1]} : vector<6x512xf32> to vector<1x512xf32>
    %143 = vector.broadcast %141 : f32 to vector<1x512xf32>
    %144 = arith.mulf %143, %142 : vector<1x512xf32>
    %145 = arith.addf %140, %144 : vector<1x512xf32>
    %c1_55 = arith.constant 1 : index
    %c3_56 = arith.constant 3 : index
    %146 = memref.load %arg1[%c1_55, %c3_56] : memref<6x4xf32, #tpu.memory_space<smem>>
    %147 = vector.extract_strided_slice %0 {offsets = [1, 0], sizes = [1, 512], strides = [1, 1]} : vector<6x512xf32> to vector<1x512xf32>
    %148 = vector.broadcast %146 : f32 to vector<1x512xf32>
    %149 = arith.mulf %148, %147 : vector<1x512xf32>
    %150 = arith.addf %145, %149 : vector<1x512xf32>
    %c2_57 = arith.constant 2 : index
    %c3_58 = arith.constant 3 : index
    %151 = memref.load %arg1[%c2_57, %c3_58] : memref<6x4xf32, #tpu.memory_space<smem>>
    %152 = vector.extract_strided_slice %0 {offsets = [2, 0], sizes = [1, 512], strides = [1, 1]} : vector<6x512xf32> to vector<1x512xf32>
    %153 = vector.broadcast %151 : f32 to vector<1x512xf32>
    %154 = arith.mulf %153, %152 : vector<1x512xf32>
    %155 = arith.addf %150, %154 : vector<1x512xf32>
    %c3_59 = arith.constant 3 : index
    %c3_60 = arith.constant 3 : index
    %156 = memref.load %arg1[%c3_59, %c3_60] : memref<6x4xf32, #tpu.memory_space<smem>>
    %157 = vector.extract_strided_slice %0 {offsets = [3, 0], sizes = [1, 512], strides = [1, 1]} : vector<6x512xf32> to vector<1x512xf32>
    %158 = vector.broadcast %156 : f32 to vector<1x512xf32>
    %159 = arith.mulf %158, %157 : vector<1x512xf32>
    %160 = arith.addf %155, %159 : vector<1x512xf32>
    %c4_61 = arith.constant 4 : index
    %c3_62 = arith.constant 3 : index
    %161 = memref.load %arg1[%c4_61, %c3_62] : memref<6x4xf32, #tpu.memory_space<smem>>
    %162 = vector.extract_strided_slice %0 {offsets = [4, 0], sizes = [1, 512], strides = [1, 1]} : vector<6x512xf32> to vector<1x512xf32>
    %163 = vector.broadcast %161 : f32 to vector<1x512xf32>
    %164 = arith.mulf %163, %162 : vector<1x512xf32>
    %165 = arith.addf %160, %164 : vector<1x512xf32>
    %c5_63 = arith.constant 5 : index
    %c3_64 = arith.constant 3 : index
    %166 = memref.load %arg1[%c5_63, %c3_64] : memref<6x4xf32, #tpu.memory_space<smem>>
    %167 = vector.extract_strided_slice %0 {offsets = [5, 0], sizes = [1, 512], strides = [1, 1]} : vector<6x512xf32> to vector<1x512xf32>
    %168 = vector.broadcast %166 : f32 to vector<1x512xf32>
    %169 = arith.mulf %168, %167 : vector<1x512xf32>
    %170 = arith.addf %165, %169 : vector<1x512xf32>
    %c3_65 = arith.constant 3 : index
    %c0_66 = arith.constant 0 : index
    %171 = memref.load %arg3[%c3_65, %c0_66] : memref<4x1xf32, #tpu.memory_space<smem>>
    %cst_67 = arith.constant 0.000000e+00 : f32
    %172 = vector.broadcast %cst_67 : f32 to vector<1x512xf32>
    %173 = arith.subf %172, %170 : vector<1x512xf32>
    %174 = math.exp %173 : vector<1x512xf32>
    %cst_68 = arith.constant 1.000000e+00 : f32
    %175 = vector.broadcast %cst_68 : f32 to vector<1x512xf32>
    %176 = arith.addf %175, %174 : vector<1x512xf32>
    %177 = tpu.reciprocal %176 {approx = true} : vector<1x512xf32> -> vector<1x512xf32>
    %178 = vector.broadcast %171 : f32 to vector<1x512xf32>
    %179 = arith.mulf %178, %177 : vector<1x512xf32>
    %180 = arith.addf %136, %179 : vector<1x512xf32>
    %cst_69 = arith.constant 0.000000e+00 : f32
    %181 = vector.broadcast %cst_69 : f32 to vector<1x512xf32>
    %182 = arith.subf %181, %180 : vector<1x512xf32>
    %183 = math.exp %182 : vector<1x512xf32>
    %cst_70 = arith.constant 1.000000e+00 : f32
    %184 = vector.broadcast %cst_70 : f32 to vector<1x512xf32>
    %185 = arith.addf %184, %183 : vector<1x512xf32>
    %186 = tpu.reciprocal %185 {approx = true} : vector<1x512xf32> -> vector<1x512xf32>
    %c0_71 = arith.constant 0 : index
    %c0_72 = arith.constant 0 : index
    %187 = vector.load %arg6[%c0_71, %c0_72] : memref<1x512xf32, #tpu.memory_space<vmem>>, vector<1x512xf32>
    tpu.vector_store %arg6[%c0_71, %c0_72], %186 {strides = array<i32>} : memref<1x512xf32, #tpu.memory_space<vmem>>, vector<1x512xf32>,
    return
  }
  func.func @transform_0(%arg0: i32) -> (i32, i32) {
    %c0_i32 = arith.constant 0 : i32
    %c0_i32_0 = arith.constant 0 : i32
    %c0_i32_1 = arith.constant 0 : i32
    return %c0_i32, %c0_i32_0 : i32, i32
  }
  func.func @transform_1(%arg0: i32) -> i32 {
    %c0_i32 = arith.constant 0 : i32
    %c0_i32_0 = arith.constant 0 : i32
    return %c0_i32 : i32
  }
  func.func @transform_2(%arg0: i32) -> (i32, i32) {
    %c0_i32 = arith.constant 0 : i32
    %c0_i32_0 = arith.constant 0 : i32
    %c0_i32_1 = arith.constant 0 : i32
    return %c0_i32, %c0_i32_0 : i32, i32
  }
  func.func @transform_3(%arg0: i32) -> i32 {
    %c0_i32 = arith.constant 0 : i32
    %c0_i32_0 = arith.constant 0 : i32
    return %c0_i32 : i32
  }
  func.func @transform_4(%arg0: i32) -> (i32, i32) {
    %c0_i32 = arith.constant 0 : i32
    %c0_i32_0 = arith.constant 0 : i32
    return %c0_i32, %arg0 : i32, i32
  }
  func.func @transform_5(%arg0: i32) -> (i32, i32) {
    %c0_i32 = arith.constant 0 : i32
    %c0_i32_0 = arith.constant 0 : i32
    return %c0_i32, %arg0 : i32, i32
  }
}

</mosaic_0001>

<llo_original>
// kernel: tpu_custom_call.1
$region0: #{tpu_custom_call.1}
  #allocation0 [shape = 'u32[]', space=smem, size = 0x4, offset = 0x4, fixed_abs, tag = 'smem constant byte address 0x4 - core index']
  #allocation1 [shape = 'u32[144,128]{1,0:T(1,128)}', space=vmem, size = 0x12000, scoped, tag = 'internal scratch']
  #allocation2 [shape = 'f32[1]{0:T(128)S(6)}', space=smem, size = 0x200, scoped, tag = 'scoped memory for tpu_custom_call.1']
  %s0 = inlined_call_operand.vmem [shape: f32[6,4], index: 0, kind: input, shape index: {}]
  %s1 = inlined_call_operand.vmem [shape: f32[4], index: 1, kind: input, shape index: {}]
  %s2 = inlined_call_operand.vmem [shape: f32[4,1], index: 2, kind: input, shape index: {}]
  %s3 = inlined_call_operand.<no memory space> [shape: f32[1], index: 3, kind: input, shape index: {}]
  %s4 = inlined_call_operand.hbm [shape: f32[6,1024], index: 4, kind: input, shape index: {}]
  %s5 = inlined_call_operand.hbm [shape: f32[1,1024], index: 5, kind: output, shape index: {}]
  %s6 = sld [smem:[#allocation0]]
  $region69: #{tpu_custom_call.1} parent=0
    _
  %s8 = ssub.s32 1, %s6
  %s9 = scalar_select 0, %s8, %s6
  %10 = sst [smem:[#allocation2]] %s3
  $region1: #{tpu_custom_call.1} parent=0
    #allocation3 [shape = 'u8[4096]{0}', space=smem, size = 0x1000, scoped, tag = 'input window, operand 0, single buffered']
    #allocation4 [shape = 's32[2]{0}', space=sflag, size = 0x8, scoped, tag = 'scoped memory for tpu_custom_call.1']
    #allocation5 [shape = 's32[2]{0}', space=sflag, size = 0x8, scoped, tag = 'scoped memory for tpu_custom_call.1']
    #allocation6 [shape = 's32[2]{0}', space=sflag, size = 0x8, scoped, tag = 'scoped memory for tpu_custom_call.1']
    #allocation7 [shape = 'u8[512]{0}', space=smem, size = 0x200, scoped, tag = 'input window, operand 1, single buffered']
    #allocation8 [shape = 's32[1]{0}', space=sflag, size = 0x4, scoped, tag = 'scoped memory for tpu_custom_call.1']
    #allocation9 [shape = 'u8[2048]{0}', space=smem, size = 0x800, scoped, tag = 'input window, operand 2, single buffered']
    #allocation10 [shape = 'u8[32768]{0}', space=vmem, size = 0x8000, scoped, tag = 'input window, operand 4']
    #allocation11 [shape = 'u8[4096]{0}', space=vmem, size = 0x1000, scoped, tag = 'output window, operand 0']
    %11 = vsyncpa [#allocation6], 0
    %12 = vsyncpa [#allocation8], 0
    %13 = vsyncpa [#allocation4], 0
    %s14 = scalar_lea.sflag [#allocation4], 1
    %15 = vsyncpa %s14, 0
    %16 = vsyncpa [#allocation5], 0
    %s17 = scalar_lea.sflag [#allocation5], 1
    %18 = vsyncpa %s17, 0
    loop: start=0, step=1, limit=4
    $region2: #{tpu_custom_call.1} parent=1 // loop_pre_header
      _
    $region3: #{tpu_custom_call.1} parent=1 // loop_header
      %s20 = sphi 0, %s24
      %p21 = scmp.ge.s32.totalorder %s20, 4
      %s28 = sphi 0, %s28
      %s30 = sphi 0, %s28
      %s31 = sphi 0, %s30
      %s45 = sphi 0, %s31
      %s49 = sphi 0, %s49
      %s51 = sphi 0, %s49
      %s52 = sphi 0, %s51
      %s66 = sphi 0, %s52
      %s70 = sphi 0, %s70
      %s72 = sphi 0, %s70
      %s73 = sphi 0, %s72
      %s87 = sphi 0, %s73
      %s91 = sphi 0, %s91
      %s93 = sphi 0, %s91
      %s94 = sphi 0, %s93
      %s108 = sphi 0, %s94
      %s114 = sphi 0, %s116
      %s117 = sphi 0, %s114
      %s118 = sphi 0, %s117
      %s134 = sphi 0, %s118
      %s140 = sphi 0, %s142
      %s143 = sphi 0, %s140
      %s144 = sphi 0, %s143
      %s160 = sphi 0, %s144
    $region4: #{tpu_custom_call.1} parent=1 // loop_header_branch
      %23 = sbr.rel (%p21) target = $region8
    $region5: #{tpu_custom_call.1} parent=1 // loop_body
      %s25 = ssub.s32 %s20, 1
      %s26 = ssub.s32 %s20, 2
      %s27 = sadd.s32 %s20, 1
      %s29 = sadd.s32 %s28, 1
      %p32 = scmp.eq.s32.totalorder %s20, 1
      %p33 = scmp.ne.s32.totalorder %s28, %s30
      %p34 = scmp.eq.s32.totalorder %s20, 0
      %p35 = por %p33, %p34
      %p36 = scmp.ne.s32.totalorder %s28, %s30
      %p37 = scmp.eq.s32.totalorder %s25, 1
      %p38 = por %p36, %p37
      %p39 = scmp.ne.s32.totalorder %s30, %s31
      %p40 = scmp.eq.s32.totalorder %s25, 0
      %p41 = por %p39, %p40
      %p42 = scmp.ne.s32.totalorder %s30, %s31
      %p43 = scmp.eq.s32.totalorder %s26, 1
      %p44 = por %p42, %p43
      %p46 = scmp.ne.s32.totalorder %s31, %s45
      %p47 = scmp.eq.s32.totalorder %s26, 0
      %p48 = por %p46, %p47
      %s50 = sadd.s32 %s49, 1
      %p53 = scmp.eq.s32.totalorder %s20, 1
      %p54 = scmp.ne.s32.totalorder %s49, %s51
      %p55 = scmp.eq.s32.totalorder %s20, 0
      %p56 = por %p54, %p55
      %p57 = scmp.ne.s32.totalorder %s49, %s51
      %p58 = scmp.eq.s32.totalorder %s25, 1
      %p59 = por %p57, %p58
      %p60 = scmp.ne.s32.totalorder %s51, %s52
      %p61 = scmp.eq.s32.totalorder %s25, 0
      %p62 = por %p60, %p61
      %p63 = scmp.ne.s32.totalorder %s51, %s52
      %p64 = scmp.eq.s32.totalorder %s26, 1
      %p65 = por %p63, %p64
      %p67 = scmp.ne.s32.totalorder %s52, %s66
      %p68 = scmp.eq.s32.totalorder %s26, 0
      %p69 = por %p67, %p68
      %s71 = sadd.s32 %s70, 1
      %p74 = scmp.eq.s32.totalorder %s20, 1
      %p75 = scmp.ne.s32.totalorder %s70, %s72
      %p76 = scmp.eq.s32.totalorder %s20, 0
      %p77 = por %p75, %p76
      %p78 = scmp.ne.s32.totalorder %s70, %s72
      %p79 = scmp.eq.s32.totalorder %s25, 1
      %p80 = por %p78, %p79
      %p81 = scmp.ne.s32.totalorder %s72, %s73
      %p82 = scmp.eq.s32.totalorder %s25, 0
      %p83 = por %p81, %p82
      %p84 = scmp.ne.s32.totalorder %s72, %s73
      %p85 = scmp.eq.s32.totalorder %s26, 1
      %p86 = por %p84, %p85
      %p88 = scmp.ne.s32.totalorder %s73, %s87
      %p89 = scmp.eq.s32.totalorder %s26, 0
      %p90 = por %p88, %p89
      %s92 = sadd.s32 %s91, 1
      %p95 = scmp.eq.s32.totalorder %s20, 1
      %p96 = scmp.ne.s32.totalorder %s91, %s93
      %p97 = scmp.eq.s32.totalorder %s20, 0
      %p98 = por %p96, %p97
      %p99 = scmp.ne.s32.totalorder %s91, %s93
      %p100 = scmp.eq.s32.totalorder %s25, 1
      %p101 = por %p99, %p100
      %p102 = scmp.ne.s32.totalorder %s93, %s94
      %p103 = scmp.eq.s32.totalorder %s25, 0
      %p104 = por %p102, %p103
      %p105 = scmp.ne.s32.totalorder %s93, %s94
      %p106 = scmp.eq.s32.totalorder %s26, 1
      %p107 = por %p105, %p106
      %p109 = scmp.ne.s32.totalorder %s94, %s108
      %p110 = scmp.eq.s32.totalorder %s26, 0
      %p111 = por %p109, %p110
      %s112 = ssub.s32 %s20, %s27
      %p113 = scmp.eq.s32.totalorder %s112, 0
      %s115 = sadd.s32 %s114, 1
      %s116 = scalar_select %p113, %s114, %s115
      %p119 = pneg %p113
      %p120 = scmp.eq.s32.totalorder %s20, 1
      %p121 = por %p119, %p120
      %p122 = scmp.ne.s32.totalorder %s114, %s117
      %p123 = scmp.eq.s32.totalorder %s20, 0
      %p124 = por %p122, %p123
      %p125 = scmp.ne.s32.totalorder %s114, %s117
      %p126 = scmp.eq.s32.totalorder %s25, 1
      %p127 = por %p125, %p126
      %p128 = scmp.ne.s32.totalorder %s117, %s118
      %p129 = scmp.eq.s32.totalorder %s25, 0
      %p130 = por %p128, %p129
      %p131 = scmp.ne.s32.totalorder %s117, %s118
      %p132 = scmp.eq.s32.totalorder %s26, 1
      %p133 = por %p131, %p132
      %p135 = scmp.ne.s32.totalorder %s118, %s134
      %p136 = scmp.eq.s32.totalorder %s26, 0
      %p137 = por %p135, %p136
      %s138 = ssub.s32 %s20, %s27
      %p139 = scmp.eq.s32.totalorder %s138, 0
      %s141 = sadd.s32 %s140, 1
      %s142 = scalar_select %p139, %s140, %s141
      %p145 = pneg %p139
      %p146 = scmp.eq.s32.totalorder %s20, 1
      %p147 = por %p145, %p146
      %p148 = scmp.ne.s32.totalorder %s140, %s143
      %p149 = scmp.eq.s32.totalorder %s20, 0
      %p150 = por %p148, %p149
      %p151 = scmp.ne.s32.totalorder %s140, %s143
      %p152 = scmp.eq.s32.totalorder %s25, 1
      %p153 = por %p151, %p152
      %p154 = scmp.ne.s32.totalorder %s143, %s144
      %p155 = scmp.eq.s32.totalorder %s25, 0
      %p156 = por %p154, %p155
      %p157 = scmp.ne.s32.totalorder %s143, %s144
      %p158 = scmp.eq.s32.totalorder %s26, 1
      %p159 = por %p157, %p158
      %p161 = scmp.ne.s32.totalorder %s144, %s160
      %p162 = scmp.eq.s32.totalorder %s26, 0
      %p163 = por %p161, %p162
      %p164 = scmp.le.s32.totalorder 1, %s20
      %p165 = scmp.lt.s32.totalorder %s20, 3
      %p166 = pnand %p164, %p165
      %p167 = pneg %p166
      // Predicated region
      $region9: #{tpu_custom_call.1} parent=5 // pred_check
        _
      $region10: #{tpu_custom_call.1} parent=5 // pred_check_branch
        %169 = sbr.rel (%p166) target = $region12
      $region11: #{tpu_custom_call.1} parent=5 // pred_region
        %s170 = ssub.s32 %s20, 1
        // Predicated region
        $region13: #{tpu_custom_call.1} parent=11 // pred_check
          %p171 = pneg %p41
        $region14: #{tpu_custom_call.1} parent=11 // pred_check_branch
          %173 = sbr.rel (%p171) target = $region16
        $region15: #{tpu_custom_call.1} parent=11 // pred_region
          %s175 = ssub.s32 128, 128
          %176 = vsyncadd [#allocation6], %s175
          %s178 = sshll.u32 %s0, 4
          %s179 = int_to_ptr.vmem [resolvable:$true] %s178
          %181 = dma.vmem_to_smem %s179, 128, [#allocation3], [#allocation6]
        $region16: #{tpu_custom_call.1} parent=11 // pred_fallthru
          _
        // Predicated region
        $region17: #{tpu_custom_call.1} parent=11 // pred_check
          %p182 = pneg %p62
        $region18: #{tpu_custom_call.1} parent=11 // pred_check_branch
          %184 = sbr.rel (%p182) target = $region20
        $region19: #{tpu_custom_call.1} parent=11 // pred_region
          %s186 = ssub.s32 16, 16
          %187 = vsyncadd [#allocation8], %s186
          %s189 = sshll.u32 %s1, 4
          %s190 = int_to_ptr.vmem [resolvable:$true] %s189
          %192 = dma.vmem_to_smem %s190, 16, [#allocation7], [#allocation8]
        $region20: #{tpu_custom_call.1} parent=11 // pred_fallthru
          _
        // Predicated region
        $region21: #{tpu_custom_call.1} parent=11 // pred_check
          %p193 = pneg %p83
        $region22: #{tpu_custom_call.1} parent=11 // pred_check_branch
          %195 = sbr.rel (%p193) target = $region24
        $region23: #{tpu_custom_call.1} parent=11 // pred_region
          %s197 = ssub.s32 64, 64
          %198 = vsyncadd [#allocation8], %s197
          %s200 = sshll.u32 %s2, 4
          %s201 = int_to_ptr.vmem [resolvable:$true] %s200
          %203 = dma.vmem_to_smem %s201, 64, [#allocation9], [#allocation8]
        $region24: #{tpu_custom_call.1} parent=11 // pred_fallthru
          _
        // Predicated region
        $region25: #{tpu_custom_call.1} parent=11 // pred_check
          %p204 = pneg %p104
        $region26: #{tpu_custom_call.1} parent=11 // pred_check_branch
          %206 = sbr.rel (%p204) target = $region28
        $region27: #{tpu_custom_call.1} parent=11 // pred_region
          _
        $region28: #{tpu_custom_call.1} parent=11 // pred_fallthru
          _
      $region12: #{tpu_custom_call.1} parent=5 // pred_fallthru
        _
      %p207 = scmp.lt.s32.totalorder %s20, 2
      // Predicated region
      $region29: #{tpu_custom_call.1} parent=5 // pred_check
        %p208 = pneg %p207
      $region30: #{tpu_custom_call.1} parent=5 // pred_check_branch
        %210 = sbr.rel (%p208) target = $region32
      $region31: #{tpu_custom_call.1} parent=5 // pred_region
        // Predicated region
        $region33: #{tpu_custom_call.1} parent=31 // pred_check
          %p211 = pneg %p124
        $region34: #{tpu_custom_call.1} parent=31 // pred_check_branch
          %213 = sbr.rel (%p211) target = $region36
        $region35: #{tpu_custom_call.1} parent=31 // pred_region
          %s214 = sand.u32 %s114, 1
          %s215 = scalar_lea.sflag [#allocation4], %s214
          %s216 = sand.u32 %s114, 1
          %s217 = smul.addr %s216, 32
          %s218 = scalar_lea.vmem [#allocation10], %s217
          %s219 = smul.u32 4, %s20
          %s221 = ssub.s32 512, 512
          %222 = vsyncadd %s215, %s221
          %s223 = smul.addr %s219, 128
          %s224 = scalar_lea.hbm %s4, %s223
          %s226 = sshll.u32 %s218, 4
          %s227 = int_to_ptr.vmem [resolvable:$true] %s226
          %229 = dma.hbm_to_vmem [thread:$0]  %s224, 512, %s227, %s215
        $region36: #{tpu_custom_call.1} parent=31 // pred_fallthru
          _
      $region32: #{tpu_custom_call.1} parent=5 // pred_fallthru
        _
      %p230 = scmp.le.s32.totalorder 1, %s20
      %p231 = scmp.lt.s32.totalorder %s20, 3
      %p232 = pnand %p230, %p231
      %p233 = pneg %p232
      // Predicated region
      $region37: #{tpu_custom_call.1} parent=5 // pred_check
        _
      $region38: #{tpu_custom_call.1} parent=5 // pred_check_branch
        %235 = sbr.rel (%p232) target = $region40
      $region39: #{tpu_custom_call.1} parent=5 // pred_region
        %s236 = ssub.s32 %s20, 1
        // Predicated region
        $region41: #{tpu_custom_call.1} parent=39 // pred_check
          %p237 = pneg %p41
        $region42: #{tpu_custom_call.1} parent=39 // pred_check_branch
          %239 = sbr.rel (%p237) target = $region44
        $region43: #{tpu_custom_call.1} parent=39 // pred_region
          %240 = dma.done [#allocation6], 128
        $region44: #{tpu_custom_call.1} parent=39 // pred_fallthru
          _
        // Predicated region
        $region45: #{tpu_custom_call.1} parent=39 // pred_check
          %p241 = pneg %p62
        $region46: #{tpu_custom_call.1} parent=39 // pred_check_branch
          %243 = sbr.rel (%p241) target = $region48
        $region47: #{tpu_custom_call.1} parent=39 // pred_region
          %244 = dma.done [#allocation8], 16
        $region48: #{tpu_custom_call.1} parent=39 // pred_fallthru
          _
        // Predicated region
        $region49: #{tpu_custom_call.1} parent=39 // pred_check
          %p245 = pneg %p83
        $region50: #{tpu_custom_call.1} parent=39 // pred_check_branch
          %247 = sbr.rel (%p245) target = $region52
        $region51: #{tpu_custom_call.1} parent=39 // pred_region
          %248 = dma.done [#allocation8], 64
        $region52: #{tpu_custom_call.1} parent=39 // pred_fallthru
          _
        %s249 = sand.u32 %s117, 1
        %s250 = scalar_lea.sflag [#allocation4], %s249
        %s251 = sand.u32 %s117, 1
        %s252 = smul.addr %s251, 32
        %s253 = scalar_lea.vmem [#allocation10], %s252
        // Predicated region
        $region53: #{tpu_custom_call.1} parent=39 // pred_check
          %p254 = pneg %p130
        $region54: #{tpu_custom_call.1} parent=39 // pred_check_branch
          %256 = sbr.rel (%p254) target = $region56
        $region55: #{tpu_custom_call.1} parent=39 // pred_region
          %257 = dma.done %s250, 512
        $region56: #{tpu_custom_call.1} parent=39 // pred_fallthru
          _
        %258 = sfence
        %p259 = pneg %p41
        %p260 = pneg %p38
        %p261 = pneg %p62
        %p262 = pneg %p59
        %p263 = pneg %p83
        %p264 = pneg %p80
        %p265 = pneg %p104
        %p266 = pneg %p101
        %s267 = sand.u32 %s117, 1
        %s268 = scalar_lea.sflag [#allocation4], %s267
        %s269 = sand.u32 %s117, 1
        %s270 = smul.addr %s269, 32
        %s271 = scalar_lea.vmem [#allocation10], %s270
        %p272 = pneg %p130
        %p273 = pneg %p127
        %p274 = pneg %p156
        %p275 = pneg %p153
        %s276 = sand.u32 %s143, 1
        %s277 = scalar_lea.sflag [#allocation5], %s276
        %s278 = sand.u32 %s143, 1
        %s279 = smul.addr %s278, 4
        %s280 = scalar_lea.vmem [#allocation11], %s279
        %s281 = smul.u32 4, %s25
        %s282 = smul.u32 4, %s25
        %v283 = vld [vmem:[%s253] sm:$0x3f]
        %v284 = vld [vmem:[%s253 + $0x8] sm:$0x3f]
        %v285 = vld [vmem:[%s253 + $0x10] sm:$0x3f]
        %v286 = vld [vmem:[%s253 + $0x18] sm:$0x3f]
        %s287 = sld [smem:[#allocation2]]
        %v288 = vstv %s287
        %v289 = vadd.f32 %v288, 0.0
        %s290 = sld [smem:[#allocation7]]
        %v291 = vstv %s290
        %v292 = vadd.f32 %v291, 0.0
        %s293 = sld [smem:[#allocation3]]
        %v294 = vstv %s293
        %v295 = vmul.f32 %v294, %v283
        %v296 = vmul.f32 %v294, %v284
        %v297 = vmul.f32 %v294, %v285
        %v298 = vmul.f32 %v294, %v286
        %v299 = vadd.f32 %v292, %v295
        %v300 = vadd.f32 %v292, %v296
        %v301 = vadd.f32 %v292, %v297
        %v302 = vadd.f32 %v292, %v298
        %s303 = sld [smem:[#allocation3 + $0x80]]
        %v304 = vstv %s303
        %v305 = vmul.f32 %v304, %v283
        %v306 = vmul.f32 %v304, %v284
        %v307 = vmul.f32 %v304, %v285
        %v308 = vmul.f32 %v304, %v286
        %v313 = vrot.slane %v305, 1
        %v314 = vrot.slane %v306, 1
        %v315 = vrot.slane %v307, 1
        %v316 = vrot.slane %v308, 1
        %v321 = vadd.f32 %v299, %v313
        %v322 = vadd.f32 %v300, %v314
        %v323 = vadd.f32 %v301, %v315
        %v324 = vadd.f32 %v302, %v316
        %s325 = sld [smem:[#allocation3 + $0x100]]
        %v326 = vstv %s325
        %v327 = vmul.f32 %v326, %v283
        %v328 = vmul.f32 %v326, %v284
        %v329 = vmul.f32 %v326, %v285
        %v330 = vmul.f32 %v326, %v286
        %v335 = vrot.slane %v327, 2
        %v336 = vrot.slane %v328, 2
        %v337 = vrot.slane %v329, 2
        %v338 = vrot.slane %v330, 2
        %v343 = vadd.f32 %v321, %v335
        %v344 = vadd.f32 %v322, %v336
        %v345 = vadd.f32 %v323, %v337
        %v346 = vadd.f32 %v324, %v338
        %s347 = sld [smem:[#allocation3 + $0x180]]
        %v348 = vstv %s347
        %v349 = vmul.f32 %v348, %v283
        %v350 = vmul.f32 %v348, %v284
        %v351 = vmul.f32 %v348, %v285
        %v352 = vmul.f32 %v348, %v286
        %v357 = vrot.slane %v349, 3
        %v358 = vrot.slane %v350, 3
        %v359 = vrot.slane %v351, 3
        %v360 = vrot.slane %v352, 3
        %v365 = vadd.f32 %v343, %v357
        %v366 = vadd.f32 %v344, %v358
        %v367 = vadd.f32 %v345, %v359
        %v368 = vadd.f32 %v346, %v360
        %s369 = sld [smem:[#allocation3 + $0x200]]
        %v370 = vstv %s369
        %v371 = vmul.f32 %v370, %v283
        %v372 = vmul.f32 %v370, %v284
        %v373 = vmul.f32 %v370, %v285
        %v374 = vmul.f32 %v370, %v286
        %v379 = vrot.slane %v371, 4
        %v380 = vrot.slane %v372, 4
        %v381 = vrot.slane %v373, 4
        %v382 = vrot.slane %v374, 4
        %v387 = vadd.f32 %v365, %v379
        %v388 = vadd.f32 %v366, %v380
        %v389 = vadd.f32 %v367, %v381
        %v390 = vadd.f32 %v368, %v382
        %s391 = sld [smem:[#allocation3 + $0x280]]
        %v392 = vstv %s391
        %v393 = vmul.f32 %v392, %v283
        %v394 = vmul.f32 %v392, %v284
        %v395 = vmul.f32 %v392, %v285
        %v396 = vmul.f32 %v392, %v286
        %v401 = vrot.slane %v393, 5
        %v402 = vrot.slane %v394, 5
        %v403 = vrot.slane %v395, 5
        %v404 = vrot.slane %v396, 5
        %v409 = vadd.f32 %v387, %v401
        %v410 = vadd.f32 %v388, %v402
        %v411 = vadd.f32 %v389, %v403
        %v412 = vadd.f32 %v390, %v404
        %s413 = sld [smem:[#allocation9]]
        %v414 = vsub.f32 0.0, %v409
        %v415 = vsub.f32 0.0, %v410
        %v416 = vsub.f32 0.0, %v411
        %v417 = vsub.f32 0.0, %v412
        %v418 = vmul.f32 %v414, 1.442695
        %v419 = vpow.pop %v418
        %v420 = vmul.f32 %v415, 1.442695
        %v421 = vpow.pop %v420
        %v422 = vmul.f32 %v416, 1.442695
        %v423 = vpow.pop %v422
        %v424 = vmul.f32 %v417, 1.442695
        %v425 = vpow.pop %v424
        %v426 = vadd.f32 %v419, 1.0
        %v427 = vadd.f32 %v421, 1.0
        %v428 = vadd.f32 %v423, 1.0
        %v429 = vadd.f32 %v425, 1.0
        %v430 = vrcp.pop %v426
        %v431 = vrcp.pop %v427
        %v432 = vrcp.pop %v428
        %v433 = vrcp.pop %v429
        %v434 = vstv %s413
        %v435 = vmul.f32 %v434, %v430
        %v436 = vmul.f32 %v434, %v431
        %v437 = vmul.f32 %v434, %v432
        %v438 = vmul.f32 %v434, %v433
        %v439 = vadd.f32 %v289, %v435
        %v440 = vadd.f32 %v289, %v436
        %v441 = vadd.f32 %v289, %v437
        %v442 = vadd.f32 %v289, %v438
        %s443 = sld [smem:[#allocation7 + $0x1]]
        %v444 = vstv %s443
        %v445 = vadd.f32 %v444, 0.0
        %s446 = sld [smem:[#allocation3 + $0x1]]
        %v447 = vstv %s446
        %v448 = vmul.f32 %v447, %v283
        %v449 = vmul.f32 %v447, %v284
        %v450 = vmul.f32 %v447, %v285
        %v451 = vmul.f32 %v447, %v286
        %v452 = vadd.f32 %v445, %v448
        %v453 = vadd.f32 %v445, %v449
        %v454 = vadd.f32 %v445, %v450
        %v455 = vadd.f32 %v445, %v451
        %s456 = sld [smem:[#allocation3 + $0x81]]
        %v457 = vstv %s456
        %v458 = vmul.f32 %v457, %v283
        %v459 = vmul.f32 %v457, %v284
        %v460 = vmul.f32 %v457, %v285
        %v461 = vmul.f32 %v457, %v286
        %v466 = vrot.slane %v458, 1
        %v467 = vrot.slane %v459, 1
        %v468 = vrot.slane %v460, 1
        %v469 = vrot.slane %v461, 1
        %v474 = vadd.f32 %v452, %v466
        %v475 = vadd.f32 %v453, %v467
        %v476 = vadd.f32 %v454, %v468
        %v477 = vadd.f32 %v455, %v469
        %s478 = sld [smem:[#allocation3 + $0x101]]
        %v479 = vstv %s478
        %v480 = vmul.f32 %v479, %v283
        %v481 = vmul.f32 %v479, %v284
        %v482 = vmul.f32 %v479, %v285
        %v483 = vmul.f32 %v479, %v286
        %v488 = vrot.slane %v480, 2
        %v489 = vrot.slane %v481, 2
        %v490 = vrot.slane %v482, 2
        %v491 = vrot.slane %v483, 2
        %v496 = vadd.f32 %v474, %v488
        %v497 = vadd.f32 %v475, %v489
        %v498 = vadd.f32 %v476, %v490
        %v499 = vadd.f32 %v477, %v491
        %s500 = sld [smem:[#allocation3 + $0x181]]
        %v501 = vstv %s500
        %v502 = vmul.f32 %v501, %v283
        %v503 = vmul.f32 %v501, %v284
        %v504 = vmul.f32 %v501, %v285
        %v505 = vmul.f32 %v501, %v286
        %v510 = vrot.slane %v502, 3
        %v511 = vrot.slane %v503, 3
        %v512 = vrot.slane %v504, 3
        %v513 = vrot.slane %v505, 3
        %v518 = vadd.f32 %v496, %v510
        %v519 = vadd.f32 %v497, %v511
        %v520 = vadd.f32 %v498, %v512
        %v521 = vadd.f32 %v499, %v513
        %s522 = sld [smem:[#allocation3 + $0x201]]
        %v523 = vstv %s522
        %v524 = vmul.f32 %v523, %v283
        %v525 = vmul.f32 %v523, %v284
        %v526 = vmul.f32 %v523, %v285
        %v527 = vmul.f32 %v523, %v286
        %v532 = vrot.slane %v524, 4
        %v533 = vrot.slane %v525, 4
        %v534 = vrot.slane %v526, 4
        %v535 = vrot.slane %v527, 4
        %v540 = vadd.f32 %v518, %v532
        %v541 = vadd.f32 %v519, %v533
        %v542 = vadd.f32 %v520, %v534
        %v543 = vadd.f32 %v521, %v535
        %s544 = sld [smem:[#allocation3 + $0x281]]
        %v545 = vstv %s544
        %v546 = vmul.f32 %v545, %v283
        %v547 = vmul.f32 %v545, %v284
        %v548 = vmul.f32 %v545, %v285
        %v549 = vmul.f32 %v545, %v286
        %v554 = vrot.slane %v546, 5
        %v555 = vrot.slane %v547, 5
        %v556 = vrot.slane %v548, 5
        %v557 = vrot.slane %v549, 5
        %v562 = vadd.f32 %v540, %v554
        %v563 = vadd.f32 %v541, %v555
        %v564 = vadd.f32 %v542, %v556
        %v565 = vadd.f32 %v543, %v557
        %s566 = sld [smem:[#allocation9 + $0x80]]
        %v567 = vsub.f32 0.0, %v562
        %v568 = vsub.f32 0.0, %v563
        %v569 = vsub.f32 0.0, %v564
        %v570 = vsub.f32 0.0, %v565
        %v571 = vmul.f32 %v567, 1.442695
        %v572 = vpow.pop %v571
        %v573 = vmul.f32 %v568, 1.442695
        %v574 = vpow.pop %v573
        %v575 = vmul.f32 %v569, 1.442695
        %v576 = vpow.pop %v575
        %v577 = vmul.f32 %v570, 1.442695
        %v578 = vpow.pop %v577
        %v579 = vadd.f32 %v572, 1.0
        %v580 = vadd.f32 %v574, 1.0
        %v581 = vadd.f32 %v576, 1.0
        %v582 = vadd.f32 %v578, 1.0
        %v583 = vrcp.pop %v579
        %v584 = vrcp.pop %v580
        %v585 = vrcp.pop %v581
        %v586 = vrcp.pop %v582
        %v587 = vstv %s566
        %v588 = vmul.f32 %v587, %v583
        %v589 = vmul.f32 %v587, %v584
        %v590 = vmul.f32 %v587, %v585
        %v591 = vmul.f32 %v587, %v586
        %v592 = vadd.f32 %v439, %v588
        %v593 = vadd.f32 %v440, %v589
        %v594 = vadd.f32 %v441, %v590
        %v595 = vadd.f32 %v442, %v591
        %s596 = sld [smem:[#allocation7 + $0x2]]
        %v597 = vstv %s596
        %v598 = vadd.f32 %v597, 0.0
        %s599 = sld [smem:[#allocation3 + $0x2]]
        %v600 = vstv %s599
        %v601 = vmul.f32 %v600, %v283
        %v602 = vmul.f32 %v600, %v284
        %v603 = vmul.f32 %v600, %v285
        %v604 = vmul.f32 %v600, %v286
        %v605 = vadd.f32 %v598, %v601
        %v606 = vadd.f32 %v598, %v602
        %v607 = vadd.f32 %v598, %v603
        %v608 = vadd.f32 %v598, %v604
        %s609 = sld [smem:[#allocation3 + $0x82]]
        %v610 = vstv %s609
        %v611 = vmul.f32 %v610, %v283
        %v612 = vmul.f32 %v610, %v284
        %v613 = vmul.f32 %v610, %v285
        %v614 = vmul.f32 %v610, %v286
        %v619 = vrot.slane %v611, 1
        %v620 = vrot.slane %v612, 1
        %v621 = vrot.slane %v613, 1
        %v622 = vrot.slane %v614, 1
        %v627 = vadd.f32 %v605, %v619
        %v628 = vadd.f32 %v606, %v620
        %v629 = vadd.f32 %v607, %v621
        %v630 = vadd.f32 %v608, %v622
        %s631 = sld [smem:[#allocation3 + $0x102]]
        %v632 = vstv %s631
        %v633 = vmul.f32 %v632, %v283
        %v634 = vmul.f32 %v632, %v284
        %v635 = vmul.f32 %v632, %v285
        %v636 = vmul.f32 %v632, %v286
        %v641 = vrot.slane %v633, 2
        %v642 = vrot.slane %v634, 2
        %v643 = vrot.slane %v635, 2
        %v644 = vrot.slane %v636, 2
        %v649 = vadd.f32 %v627, %v641
        %v650 = vadd.f32 %v628, %v642
        %v651 = vadd.f32 %v629, %v643
        %v652 = vadd.f32 %v630, %v644
        %s653 = sld [smem:[#allocation3 + $0x182]]
        %v654 = vstv %s653
        %v655 = vmul.f32 %v654, %v283
        %v656 = vmul.f32 %v654, %v284
        %v657 = vmul.f32 %v654, %v285
        %v658 = vmul.f32 %v654, %v286
        %v663 = vrot.slane %v655, 3
        %v664 = vrot.slane %v656, 3
        %v665 = vrot.slane %v657, 3
        %v666 = vrot.slane %v658, 3
        %v671 = vadd.f32 %v649, %v663
        %v672 = vadd.f32 %v650, %v664
        %v673 = vadd.f32 %v651, %v665
        %v674 = vadd.f32 %v652, %v666
        %s675 = sld [smem:[#allocation3 + $0x202]]
        %v676 = vstv %s675
        %v677 = vmul.f32 %v676, %v283
        %v678 = vmul.f32 %v676, %v284
        %v679 = vmul.f32 %v676, %v285
        %v680 = vmul.f32 %v676, %v286
        %v685 = vrot.slane %v677, 4
        %v686 = vrot.slane %v678, 4
        %v687 = vrot.slane %v679, 4
        %v688 = vrot.slane %v680, 4
        %v693 = vadd.f32 %v671, %v685
        %v694 = vadd.f32 %v672, %v686
        %v695 = vadd.f32 %v673, %v687
        %v696 = vadd.f32 %v674, %v688
        %s697 = sld [smem:[#allocation3 + $0x282]]
        %v698 = vstv %s697
        %v699 = vmul.f32 %v698, %v283
        %v700 = vmul.f32 %v698, %v284
        %v701 = vmul.f32 %v698, %v285
        %v702 = vmul.f32 %v698, %v286
        %v707 = vrot.slane %v699, 5
        %v708 = vrot.slane %v700, 5
        %v709 = vrot.slane %v701, 5
        %v710 = vrot.slane %v702, 5
        %v715 = vadd.f32 %v693, %v707
        %v716 = vadd.f32 %v694, %v708
        %v717 = vadd.f32 %v695, %v709
        %v718 = vadd.f32 %v696, %v710
        %s719 = sld [smem:[#allocation9 + $0x100]]
        %v720 = vsub.f32 0.0, %v715
        %v721 = vsub.f32 0.0, %v716
        %v722 = vsub.f32 0.0, %v717
        %v723 = vsub.f32 0.0, %v718
        %v724 = vmul.f32 %v720, 1.442695
        %v725 = vpow.pop %v724
        %v726 = vmul.f32 %v721, 1.442695
        %v727 = vpow.pop %v726
        %v728 = vmul.f32 %v722, 1.442695
        %v729 = vpow.pop %v728
        %v730 = vmul.f32 %v723, 1.442695
        %v731 = vpow.pop %v730
        %v732 = vadd.f32 %v725, 1.0
        %v733 = vadd.f32 %v727, 1.0
        %v734 = vadd.f32 %v729, 1.0
        %v735 = vadd.f32 %v731, 1.0
        %v736 = vrcp.pop %v732
        %v737 = vrcp.pop %v733
        %v738 = vrcp.pop %v734
        %v739 = vrcp.pop %v735
        %v740 = vstv %s719
        %v741 = vmul.f32 %v740, %v736
        %v742 = vmul.f32 %v740, %v737
        %v743 = vmul.f32 %v740, %v738
        %v744 = vmul.f32 %v740, %v739
        %v745 = vadd.f32 %v592, %v741
        %v746 = vadd.f32 %v593, %v742
        %v747 = vadd.f32 %v594, %v743
        %v748 = vadd.f32 %v595, %v744
        %s749 = sld [smem:[#allocation7 + $0x3]]
        %v750 = vstv %s749
        %v751 = vadd.f32 %v750, 0.0
        %s752 = sld [smem:[#allocation3 + $0x3]]
        %v753 = vstv %s752
        %v754 = vmul.f32 %v753, %v283
        %v755 = vmul.f32 %v753, %v284
        %v756 = vmul.f32 %v753, %v285
        %v757 = vmul.f32 %v753, %v286
        %v758 = vadd.f32 %v751, %v754
        %v759 = vadd.f32 %v751, %v755
        %v760 = vadd.f32 %v751, %v756
        %v761 = vadd.f32 %v751, %v757
        %s762 = sld [smem:[#allocation3 + $0x83]]
        %v763 = vstv %s762
        %v764 = vmul.f32 %v763, %v283
        %v765 = vmul.f32 %v763, %v284
        %v766 = vmul.f32 %v763, %v285
        %v767 = vmul.f32 %v763, %v286
        %v772 = vrot.slane %v764, 1
        %v773 = vrot.slane %v765, 1
        %v774 = vrot.slane %v766, 1
        %v775 = vrot.slane %v767, 1
        %v780 = vadd.f32 %v758, %v772
        %v781 = vadd.f32 %v759, %v773
        %v782 = vadd.f32 %v760, %v774
        %v783 = vadd.f32 %v761, %v775
        %s784 = sld [smem:[#allocation3 + $0x103]]
        %v785 = vstv %s784
        %v786 = vmul.f32 %v785, %v283
        %v787 = vmul.f32 %v785, %v284
        %v788 = vmul.f32 %v785, %v285
        %v789 = vmul.f32 %v785, %v286
        %v794 = vrot.slane %v786, 2
        %v795 = vrot.slane %v787, 2
        %v796 = vrot.slane %v788, 2
        %v797 = vrot.slane %v789, 2
        %v802 = vadd.f32 %v780, %v794
        %v803 = vadd.f32 %v781, %v795
        %v804 = vadd.f32 %v782, %v796
        %v805 = vadd.f32 %v783, %v797
        %s806 = sld [smem:[#allocation3 + $0x183]]
        %v807 = vstv %s806
        %v808 = vmul.f32 %v807, %v283
        %v809 = vmul.f32 %v807, %v284
        %v810 = vmul.f32 %v807, %v285
        %v811 = vmul.f32 %v807, %v286
        %v816 = vrot.slane %v808, 3
        %v817 = vrot.slane %v809, 3
        %v818 = vrot.slane %v810, 3
        %v819 = vrot.slane %v811, 3
        %v824 = vadd.f32 %v802, %v816
        %v825 = vadd.f32 %v803, %v817
        %v826 = vadd.f32 %v804, %v818
        %v827 = vadd.f32 %v805, %v819
        %s828 = sld [smem:[#allocation3 + $0x203]]
        %v829 = vstv %s828
        %v830 = vmul.f32 %v829, %v283
        %v831 = vmul.f32 %v829, %v284
        %v832 = vmul.f32 %v829, %v285
        %v833 = vmul.f32 %v829, %v286
        %v838 = vrot.slane %v830, 4
        %v839 = vrot.slane %v831, 4
        %v840 = vrot.slane %v832, 4
        %v841 = vrot.slane %v833, 4
        %v846 = vadd.f32 %v824, %v838
        %v847 = vadd.f32 %v825, %v839
        %v848 = vadd.f32 %v826, %v840
        %v849 = vadd.f32 %v827, %v841
        %s850 = sld [smem:[#allocation3 + $0x283]]
        %v851 = vstv %s850
        %v852 = vmul.f32 %v851, %v283
        %v853 = vmul.f32 %v851, %v284
        %v854 = vmul.f32 %v851, %v285
        %v855 = vmul.f32 %v851, %v286
        %v860 = vrot.slane %v852, 5
        %v861 = vrot.slane %v853, 5
        %v862 = vrot.slane %v854, 5
        %v863 = vrot.slane %v855, 5
        %v868 = vadd.f32 %v846, %v860
        %v869 = vadd.f32 %v847, %v861
        %v870 = vadd.f32 %v848, %v862
        %v871 = vadd.f32 %v849, %v863
        %s872 = sld [smem:[#allocation9 + $0x180]]
        %v873 = vsub.f32 0.0, %v868
        %v874 = vsub.f32 0.0, %v869
        %v875 = vsub.f32 0.0, %v870
        %v876 = vsub.f32 0.0, %v871
        %v877 = vmul.f32 %v873, 1.442695
        %v878 = vpow.pop %v877
        %v879 = vmul.f32 %v874, 1.442695
        %v880 = vpow.pop %v879
        %v881 = vmul.f32 %v875, 1.442695
        %v882 = vpow.pop %v881
        %v883 = vmul.f32 %v876, 1.442695
        %v884 = vpow.pop %v883
        %v885 = vadd.f32 %v878, 1.0
        %v886 = vadd.f32 %v880, 1.0
        %v887 = vadd.f32 %v882, 1.0
        %v888 = vadd.f32 %v884, 1.0
        %v889 = vrcp.pop %v885
        %v890 = vrcp.pop %v886
        %v891 = vrcp.pop %v887
        %v892 = vrcp.pop %v888
        %v893 = vstv %s872
        %v894 = vmul.f32 %v893, %v889
        %v895 = vmul.f32 %v893, %v890
        %v896 = vmul.f32 %v893, %v891
        %v897 = vmul.f32 %v893, %v892
        %v898 = vadd.f32 %v745, %v894
        %v899 = vadd.f32 %v746, %v895
        %v900 = vadd.f32 %v747, %v896
        %v901 = vadd.f32 %v748, %v897
        %v902 = vsub.f32 0.0, %v898
        %v903 = vsub.f32 0.0, %v899
        %v904 = vsub.f32 0.0, %v900
        %v905 = vsub.f32 0.0, %v901
        %v906 = vmul.f32 %v902, 1.442695
        %v907 = vpow.pop %v906
        %v908 = vmul.f32 %v903, 1.442695
        %v909 = vpow.pop %v908
        %v910 = vmul.f32 %v904, 1.442695
        %v911 = vpow.pop %v910
        %v912 = vmul.f32 %v905, 1.442695
        %v913 = vpow.pop %v912
        %v914 = vadd.f32 %v907, 1.0
        %v915 = vadd.f32 %v909, 1.0
        %v916 = vadd.f32 %v911, 1.0
        %v917 = vadd.f32 %v913, 1.0
        %v918 = vrcp.pop %v914
        %v919 = vrcp.pop %v915
        %v920 = vrcp.pop %v916
        %v921 = vrcp.pop %v917
        %v926 = vcombine.low %v918, %v919
        %v927 = vcombine.low %v920, %v921
        %v929 = vunpack.c.l.s4 1966171168
        %v930 = vunpack.c.0.s8 %v929
        %v931 = vlaneseq
        %v932 = vshrl.u32 %v931, 7
        %v933 = vsub.s32 %v930, %v932
        %v934 = vrot.slane %v926, %v933
        %v936 = vunpack.c.l.s4 1966171168
        %v937 = vunpack.c.0.s8 %v936
        %v938 = vlaneseq
        %v939 = vshrl.u32 %v938, 7
        %v940 = vsub.s32 %v937, %v939
        %v941 = vrot.slane %v927, %v940
        %v942 = vcombine.low %v934, %v941
        %v944 = vunpack.c.l.s4 1966171168
        %v945 = vunpack.c.0.s8 %v944
        %v946 = vlaneseq
        %v947 = vshrl.u32 %v946, 7
        %v948 = vsub.s32 %v945, %v947
        %v949 = vrot.slane %v942, %v948
        %v951 = vlaneseq
        %vm952 = vcmp.ge.s32.totalorder %v951, 0
        %vm953 = vcmp.lt.s32.totalorder %v951, 512
        %vm954 = vmand %vm952, %vm953
        %955 = vst.msk [vmem:[%s280] sm:$0xf] %vm954, %v949
        %s956 = sand.u32 %s143, 1
        %s957 = scalar_lea.sflag [#allocation5], %s956
        %s958 = sand.u32 %s143, 1
        %s959 = smul.addr %s958, 4
        %s960 = scalar_lea.vmem [#allocation11], %s959
        // Predicated region
        $region57: #{tpu_custom_call.1} parent=39 // pred_check
          %p961 = pneg %p153
        $region58: #{tpu_custom_call.1} parent=39 // pred_check_branch
          %963 = sbr.rel (%p961) target = $region60
        $region59: #{tpu_custom_call.1} parent=39 // pred_region
          %s964 = smul.u32 4, %s25
          %s966 = ssub.s32 64, 64
          %967 = vsyncadd %s957, %s966
          %s968 = smul.addr %s964, 16
          %s969 = scalar_lea.hbm %s5, %s968
          %s971 = sshll.u32 %s960, 4
          %s972 = int_to_ptr.vmem [resolvable:$true] %s971
          %974 = dma.vmem_to_hbm [thread:$0]  %s972, 64, %s969, %s957
        $region60: #{tpu_custom_call.1} parent=39 // pred_fallthru
          _
      $region40: #{tpu_custom_call.1} parent=5 // pred_fallthru
        _
      %p975 = scmp.le.s32.totalorder 2, %s20
      // Predicated region
      $region61: #{tpu_custom_call.1} parent=5 // pred_check
        %p976 = pneg %p975
      $region62: #{tpu_custom_call.1} parent=5 // pred_check_branch
        %978 = sbr.rel (%p976) target = $region64
      $region63: #{tpu_custom_call.1} parent=5 // pred_region
        %s979 = ssub.s32 %s20, 2
        // Predicated region
        $region65: #{tpu_custom_call.1} parent=63 // pred_check
          %p980 = pneg %p159
        $region66: #{tpu_custom_call.1} parent=63 // pred_check_branch
          %982 = sbr.rel (%p980) target = $region68
        $region67: #{tpu_custom_call.1} parent=63 // pred_region
          %s983 = sand.u32 %s144, 1
          %s984 = scalar_lea.sflag [#allocation5], %s983
          %s985 = sand.u32 %s144, 1
          %s986 = smul.addr %s985, 4
          %s987 = scalar_lea.vmem [#allocation11], %s986
          %988 = dma.done %s984, 64
        $region68: #{tpu_custom_call.1} parent=63 // pred_fallthru
          _
      $region64: #{tpu_custom_call.1} parent=5 // pred_fallthru
        _
    $region6: #{tpu_custom_call.1} parent=1 // loop_footer
      %s24 = sadd.s32 1, %s20
    $region7: #{tpu_custom_call.1} parent=1 // loop_footer_branch
      %19 = sbr.rel target = $region3
    $region8: #{tpu_custom_call.1} parent=1 // loop_exit
      _
    %989 = vsyncpa [#allocation4], 1
    %s990 = scalar_lea.sflag [#allocation4], 1
    %991 = vsyncpa %s990, 1
    %992 = vsyncpa [#allocation5], 1
    %s993 = scalar_lea.sflag [#allocation5], 1
    %994 = vsyncpa %s993, 1
    %995 = vsyncpa [#allocation6], 1
    %s996 = scalar_lea.sflag [#allocation6], 1
    %997 = vsyncpa %s996, 1
    %998 = vsyncpa [#allocation8], 1

</llo_original>
